<compile_context>
chip_gen: v5e
topology: v5e:2x2
jax: 0.10.0
libtpu: 0.0.40
codegen_flags: <defaults>
</compile_context>

<pallas_src>
import functools

import jax
import jax.numpy as jnp
from jax import lax
from jax.experimental import pallas as pl
from jax.experimental.pallas import tpu as pltpu

LAMBDA_L1 = 1.0
LAMBDA_L2 = 1.0
LAMBDA_COS = 0.5
_COS_EPS = 1e-8  # matches torch.nn.functional.cosine_similarity default eps

_LANE = 128
_SUBLANE = 8
# Budget for the double-buffered input tiles: 2 inputs x 2 pipeline buffers.
# Kept well inside scoped VMEM on every generation (incl. v7x's 64 MiB chip).
_INPUT_VMEM_BUDGET = 8 * 1024 * 1024
_MAX_TILE_ROWS = 1024


def _recon_loss_kernel(p_ref, t_ref, seg_ref, out_ref, *,
                       groups, tile_rows, valid_rows, needs_mask):
    """One grid step: partial sums of |d|, d^2 and per-row cosine similarity.

    p_ref / t_ref : (tile_rows, W) VMEM tiles in the native input dtype.
    seg_ref       : (W, groups) f32 segment-sum matrix (used when groups > 1).
    out_ref       : (1, 8, 128) f32 per-program partial block:
                    sublane 0 = sum|d|, 1 = sum d^2, 2 = sum cos_sim.
    """
    p = p_ref[...].astype(jnp.float32)
    t = t_ref[...].astype(jnp.float32)

    if needs_mask:
        # Rows past `valid_rows` (ragged last tile) are garbage -> zero them.
        row = (pl.program_id(0) * tile_rows
               + lax.broadcasted_iota(jnp.int32, p.shape, 0))
        keep = row < valid_rows
        p = jnp.where(keep, p, 0.0)
        t = jnp.where(keep, t, 0.0)

    d = p - t
    abs_sum = jnp.sum(jnp.abs(d))
    sq_sum = jnp.sum(d * d)

    pt = p * t
    pp = p * p
    tt = t * t
    if groups > 1:
        # Lane-dense layout: each 128-wide slab row holds `groups` original
        # feature rows.  Segmented per-row reduction == matmul with a 0/1
        # block matrix -> runs on the otherwise-idle MXU, no relayout.
        seg = seg_ref[...]
        dot = jnp.dot(pt, seg, preferred_element_type=jnp.float32)
        p2 = jnp.dot(pp, seg, preferred_element_type=jnp.float32)
        t2 = jnp.dot(tt, seg, preferred_element_type=jnp.float32)
    else:
        dot = jnp.sum(pt, axis=-1, keepdims=True)
        p2 = jnp.sum(pp, axis=-1, keepdims=True)
        t2 = jnp.sum(tt, axis=-1, keepdims=True)

    eps2 = jnp.float32(_COS_EPS * _COS_EPS)
    # rsqrt lowers to the EUP (its own VLIW slot) instead of sqrt + divide,
    # and max(||x||^2, eps^2) reproduces torch's max(||x||, eps) exactly.
    cos = dot * lax.rsqrt(jnp.maximum(p2, eps2)) * lax.rsqrt(jnp.maximum(t2, eps2))
    cos_sum = jnp.sum(cos)

    sub = lax.broadcasted_iota(jnp.int32, (1, _SUBLANE, _LANE), 1)
    out_ref[...] = jnp.where(sub == 0, abs_sum,
                   jnp.where(sub == 1, sq_sum,
                   jnp.where(sub == 2, cos_sum, 0.0)))


def _round_up(x, m):
    return (x + m - 1) // m * m


def _linear_interpolate_time(x, t_out):
    """F.interpolate(x.transpose(1,2), size=t_out, mode='linear').transpose(1,2)

    x: [B, T_in, D] -> [B, t_out, D], align_corners=False semantics.
    """
    b, t_in, d = x.shape
    if t_in == t_out:
        return x
    scale = t_in / t_out
    src = (jnp.arange(t_out, dtype=jnp.float32) + 0.5) * scale - 0.5
    src = jnp.clip(src, 0.0, float(t_in - 1))
    x0 = jnp.floor(src).astype(jnp.int32)
    x1 = jnp.minimum(x0 + 1, t_in - 1)
    w = (src - x0.astype(jnp.float32))[None, :, None]
    return x[:, x0, :] * (1.0 - w) + x[:, x1, :] * w


def _choose_tile_rows(num_rows, row_width, dtype_bytes, max_tile_rows):
    """Largest row tile that keeps 2 inputs x 2 pipeline buffers in budget."""
    budget_rows = _INPUT_VMEM_BUDGET // max(4 * row_width * dtype_bytes, 1)
    cap = max(_SUBLANE, min(max_tile_rows, budget_rows, _MAX_TILE_ROWS))
    if num_rows <= cap:
        # Single block; block dim == full array dim is always layout-legal.
        return num_rows
    return max(_SUBLANE, (cap // _SUBLANE) * _SUBLANE)


@functools.partial(jax.jit, static_argnames=("max_tile_rows",))
def reconstruction_loss(pred, target, max_tile_rows=_MAX_TILE_ROWS):
    """Pallas-backed equivalent of ReconstructionLoss.forward."""
    # Glue: time-axis linear interpolation if sequence lengths differ.
    # TODO(synk): interpolation stays in plain JAX (gather + lerp), not in-kernel.
    orig_dtype = pred.dtype
    if pred.shape[1] != target.shape[1]:
        pred = _linear_interpolate_time(pred, target.shape[1]).astype(orig_dtype)

    b, t_len, d = target.shape
    n = b * t_len

    p2 = pred.reshape(n, d)       # native dtype, no upcast in the wrapper
    t2 = target.reshape(n, d)

    # Lane-dense repack: with D < 128 a (N, D) layout wastes 128 - D lanes of
    # every vreg; fold 128 // D consecutive rows into one 128-wide row.
    if d < _LANE and _LANE % d == 0 and n % (_LANE // d) == 0:
        groups = _LANE // d
        width = _LANE
        num_rows = n // groups
        p2 = p2.reshape(num_rows, width)
        t2 = t2.reshape(num_rows, width)
        seg = (jnp.arange(width, dtype=jnp.int32)[:, None] // d
               == jnp.arange(groups, dtype=jnp.int32)[None, :]).astype(jnp.float32)
    else:
        groups = 1
        width = d
        num_rows = n
        seg = jnp.ones((d, 1), dtype=jnp.float32)  # unused in this path

    dtype_bytes = jnp.dtype(p2.dtype).itemsize
    tile_rows = _choose_tile_rows(num_rows, width, dtype_bytes, max_tile_rows)
    num_tiles = pl.cdiv(num_rows, tile_rows)
    needs_mask = (num_rows % tile_rows) != 0

    kernel = functools.partial(
        _recon_loss_kernel,
        groups=groups,
        tile_rows=tile_rows,
        valid_rows=num_rows,
        needs_mask=needs_mask,
    )

    partials = pl.pallas_call(
        kernel,
        out_shape=jax.ShapeDtypeStruct((num_tiles, _SUBLANE, _LANE), jnp.float32),
        grid_spec=pltpu.PrefetchScalarGridSpec(
            num_scalar_prefetch=0,
            grid=(num_tiles,),
            in_specs=[
                pl.BlockSpec((tile_rows, width), lambda i: (i, 0)),
                pl.BlockSpec((tile_rows, width), lambda i: (i, 0)),
                pl.BlockSpec((width, groups), lambda i: (0, 0)),
            ],
            out_specs=pl.BlockSpec((1, _SUBLANE, _LANE), lambda i: (i, 0, 0)),
        ),
        compiler_params=pltpu.CompilerParams(
            dimension_semantics=("parallel",),
            vmem_limit_bytes=32 * 1024 * 1024,
        ),
    )(p2, t2, seg)

    abs_sum = jnp.sum(partials[:, 0, 0])
    sq_sum = jnp.sum(partials[:, 1, 0])
    cos_sum = jnp.sum(partials[:, 2, 0])

    n_elem = jnp.float32(n * d)
    l1_loss = abs_sum / n_elem
    l2_loss = sq_sum / n_elem
    cos_loss = 1.0 - cos_sum / jnp.float32(n)
    return LAMBDA_L1 * l1_loss + LAMBDA_L2 * l2_loss + LAMBDA_COS * cos_loss


def _reference_loss(pred, target):
    """Pure-JAX reference for validation."""
    orig_dtype = pred.dtype
    if pred.shape[1] != target.shape[1]:
        pred = _linear_interpolate_time(pred, target.shape[1]).astype(orig_dtype)
    pred = pred.astype(jnp.float32)
    target = target.astype(jnp.float32)
    l1 = jnp.mean(jnp.abs(pred - target))
    l2 = jnp.mean((pred - target) ** 2)
    pf = pred.reshape(-1, pred.shape[-1])
    tf = target.reshape(-1, target.shape[-1])
    dot = jnp.sum(pf * tf, axis=1)
    pn = jnp.maximum(jnp.linalg.norm(pf, axis=1), _COS_EPS)
    tn = jnp.maximum(jnp.linalg.norm(tf, axis=1), _COS_EPS)
    cos = jnp.mean(dot / (pn * tn))
    return LAMBDA_L1 * l1 + LAMBDA_L2 * l2 + LAMBDA_COS * (1.0 - cos)


if __name__ == "__main__":
    key = jax.random.PRNGKey(0)
    k1, k2, k3, k4, k5, k6 = jax.random.split(key, 6)

    # Case 1: lane-dense path (D=32 -> 4 feature rows per 128-lane slab row).
    B, T, D = 2, 8, 32
    pred = jax.random.normal(k1, (B, T, D), dtype=jnp.float32)
    target = jax.random.normal(k2, (B, T, D), dtype=jnp.float32)
    loss = jax.block_until_ready(reconstruction_loss(pred, target))
    ref = _reference_loss(pred, target)
    assert jnp.allclose(loss, ref, rtol=1e-4, atol=1e-5), (loss, ref)

    # Case 2: time-length mismatch (interpolation glue) + generic path (D=48),
    # multi-tile grid with a masked ragged last tile (N=33, tile=8).
    B, Tp, Tt, D2 = 3, 12, 11, 48
    pred = jax.random.normal(k3, (B, Tp, D2), dtype=jnp.float32)
    target = jax.random.normal(k4, (B, Tt, D2), dtype=jnp.float32)
    loss = jax.block_until_ready(
        reconstruction_loss(pred, target, max_tile_rows=8))
    ref = _reference_loss(pred, target)
    assert jnp.allclose(loss, ref, rtol=1e-4, atol=1e-5), (loss, ref)

    # Case 3: bf16 inputs streamed at native width (no wrapper upcast).
    pred = jax.random.normal(k5, (2, 8, 32), dtype=jnp.bfloat16)
    target = jax.random.normal(k6, (2, 8, 32), dtype=jnp.bfloat16)
    loss = jax.block_until_ready(reconstruction_loss(pred, target))
    ref = _reference_loss(pred, target)
    assert jnp.allclose(loss, ref, rtol=1e-4, atol=1e-4), (loss, ref)

    print("KERNEL_OK")
</pallas_src>

<mosaic_0001>
module attributes {stable_mosaic.version = 11 : i64} {
  func.func @_recon_loss_kernel(%arg0: i32, %arg1: memref<4x128xf32, #tpu.memory_space<vmem>>, %arg2: memref<4x128xf32, #tpu.memory_space<vmem>>, %arg3: memref<128x4xf32, #tpu.memory_space<vmem>>, %arg4: memref<1x8x128xf32, #tpu.memory_space<vmem>>) attributes {dimension_semantics = [#tpu.dimension_semantics<parallel>], iteration_bounds = array<i64: 1>, scalar_prefetch = 0 : i64, scratch_operands = 0 : i64, tpu.core_type = #tpu.core_type<tc>, window_params = [{transform_indices = @transform_0, window_bounds = array<i64: 4, 128>}, {transform_indices = @transform_1, window_bounds = array<i64: 4, 128>}, {pipeline_mode = #tpu.pipeline_mode<synchronous>, transform_indices = @transform_2, window_bounds = array<i64: 128, 4>}, {transform_indices = @transform_3, window_bounds = array<i64: 1, 8, 128>}]} {
    %c0 = arith.constant 0 : index
    %c0_0 = arith.constant 0 : index
    %0 = vector.load %arg1[%c0, %c0_0] : memref<4x128xf32, #tpu.memory_space<vmem>>, vector<4x128xf32>
    %c0_1 = arith.constant 0 : index
    %c0_2 = arith.constant 0 : index
    %1 = vector.load %arg2[%c0_1, %c0_2] : memref<4x128xf32, #tpu.memory_space<vmem>>, vector<4x128xf32>
    %2 = arith.subf %0, %1 : vector<4x128xf32>
    %3 = math.absf %2 : vector<4x128xf32>
    %4 = vector.shape_cast %3 : vector<4x128xf32> to vector<1x4x128xf32>
    %cst = arith.constant dense<0.000000e+00> : vector<1xf32>
    %5 = vector.multi_reduction <add>, %4, %cst [1, 2] : vector<1x4x128xf32> to vector<1xf32>
    %6 = vector.shape_cast %5 : vector<1xf32> to vector<1x1x1xf32>
    %7 = vector.extract %6[0, 0, 0] : f32 from vector<1x1x1xf32>
    %8 = arith.mulf %2, %2 : vector<4x128xf32>
    %9 = vector.shape_cast %8 : vector<4x128xf32> to vector<1x4x128xf32>
    %cst_3 = arith.constant dense<0.000000e+00> : vector<1xf32>
    %10 = vector.multi_reduction <add>, %9, %cst_3 [1, 2] : vector<1x4x128xf32> to vector<1xf32>
    %11 = vector.shape_cast %10 : vector<1xf32> to vector<1x1x1xf32>
    %12 = vector.extract %11[0, 0, 0] : f32 from vector<1x1x1xf32>
    %13 = arith.mulf %0, %1 : vector<4x128xf32>
    %14 = arith.mulf %0, %0 : vector<4x128xf32>
    %15 = arith.mulf %1, %1 : vector<4x128xf32>
    %c0_4 = arith.constant 0 : index
    %c0_5 = arith.constant 0 : index
    %16 = vector.load %arg3[%c0_4, %c0_5] : memref<128x4xf32, #tpu.memory_space<vmem>>, vector<128x4xf32>
    %cst_6 = arith.constant dense<0.000000e+00> : vector<4x4xf32>
    %17 = tpu.matmul %13, %16, %cst_6 {dimension_numbers = #tpu.dot_dimension_numbers<[1], [0], [0], [1], [0, 0, 1, 1], [], []>} : vector<4x128xf32>, vector<128x4xf32>, vector<4x4xf32> -> vector<4x4xf32>
    %cst_7 = arith.constant dense<0.000000e+00> : vector<4x4xf32>
    %18 = tpu.matmul %14, %16, %cst_7 {dimension_numbers = #tpu.dot_dimension_numbers<[1], [0], [0], [1], [0, 0, 1, 1], [], []>} : vector<4x128xf32>, vector<128x4xf32>, vector<4x4xf32> -> vector<4x4xf32>
    %cst_8 = arith.constant dense<0.000000e+00> : vector<4x4xf32>
    %19 = tpu.matmul %15, %16, %cst_8 {dimension_numbers = #tpu.dot_dimension_numbers<[1], [0], [0], [1], [0, 0, 1, 1], [], []>} : vector<4x128xf32>, vector<128x4xf32>, vector<4x4xf32> -> vector<4x4xf32>
    %cst_9 = arith.constant 1.000000e-16 : f32
    %20 = vector.broadcast %cst_9 : f32 to vector<4x4xf32>
    %21 = arith.maximumf %18, %20 : vector<4x4xf32>
    %22 = math.rsqrt %21 : vector<4x4xf32>
    %23 = arith.mulf %17, %22 : vector<4x4xf32>
    %cst_10 = arith.constant 1.000000e-16 : f32
    %24 = vector.broadcast %cst_10 : f32 to vector<4x4xf32>
    %25 = arith.maximumf %19, %24 : vector<4x4xf32>
    %26 = math.rsqrt %25 : vector<4x4xf32>
    %27 = arith.mulf %23, %26 : vector<4x4xf32>
    %28 = vector.shape_cast %27 : vector<4x4xf32> to vector<1x4x4xf32>
    %cst_11 = arith.constant dense<0.000000e+00> : vector<1xf32>
    %29 = vector.multi_reduction <add>, %28, %cst_11 [1, 2] : vector<1x4x4xf32> to vector<1xf32>
    %30 = vector.shape_cast %29 : vector<1xf32> to vector<1x1x1xf32>
    %31 = vector.extract %30[0, 0, 0] : f32 from vector<1x1x1xf32>
    %32 = tpu.iota {dimensions = array<i32: 1>} : vector<1x8x128xi32>
    %c0_i32 = arith.constant 0 : i32
    %33 = vector.broadcast %c0_i32 : i32 to vector<1x8x128xi32>
    %34 = arith.cmpi eq, %32, %33 : vector<1x8x128xi32>
    %c1_i32 = arith.constant 1 : i32
    %35 = vector.broadcast %c1_i32 : i32 to vector<1x8x128xi32>
    %36 = arith.cmpi eq, %32, %35 : vector<1x8x128xi32>
    %c2_i32 = arith.constant 2 : i32
    %37 = vector.broadcast %c2_i32 : i32 to vector<1x8x128xi32>
    %38 = arith.cmpi eq, %32, %37 : vector<1x8x128xi32>
    %cst_12 = arith.constant 0.000000e+00 : f32
    %39 = vector.broadcast %31 : f32 to vector<1x8x128xf32>
    %40 = vector.broadcast %cst_12 : f32 to vector<1x8x128xf32>
    %41 = arith.select %38, %39, %40 : vector<1x8x128xi1>, vector<1x8x128xf32>
    %42 = vector.broadcast %12 : f32 to vector<1x8x128xf32>
    %43 = arith.select %36, %42, %41 : vector<1x8x128xi1>, vector<1x8x128xf32>
    %44 = vector.broadcast %7 : f32 to vector<1x8x128xf32>
    %45 = arith.select %34, %44, %43 : vector<1x8x128xi1>, vector<1x8x128xf32>
    %c0_13 = arith.constant 0 : index
    %c0_14 = arith.constant 0 : index
    %c0_15 = arith.constant 0 : index
    %46 = vector.load %arg4[%c0_13, %c0_14, %c0_15] : memref<1x8x128xf32, #tpu.memory_space<vmem>>, vector<1x8x128xf32>
    tpu.vector_store %arg4[%c0_13, %c0_14, %c0_15], %45 {strides = array<i32>} : memref<1x8x128xf32, #tpu.memory_space<vmem>>, vector<1x8x128xf32>,
    return
  }
  func.func @transform_0(%arg0: i32) -> (i32, i32) {
    %c0_i32 = arith.constant 0 : i32
    %c0_i32_0 = arith.constant 0 : i32
    return %arg0, %c0_i32 : i32, i32
  }
  func.func @transform_1(%arg0: i32) -> (i32, i32) {
    %c0_i32 = arith.constant 0 : i32
    %c0_i32_0 = arith.constant 0 : i32
    return %arg0, %c0_i32 : i32, i32
  }
  func.func @transform_2(%arg0: i32) -> (i32, i32) {
    %c0_i32 = arith.constant 0 : i32
    %c0_i32_0 = arith.constant 0 : i32
    %c0_i32_1 = arith.constant 0 : i32
    return %c0_i32, %c0_i32_0 : i32, i32
  }
  func.func @transform_3(%arg0: i32) -> (i32, i32, i32) {
    %c0_i32 = arith.constant 0 : i32
    %c0_i32_0 = arith.constant 0 : i32
    %c0_i32_1 = arith.constant 0 : i32
    return %arg0, %c0_i32, %c0_i32_0 : i32, i32, i32
  }
}

</mosaic_0001>

<llo_original>
// kernel: reconstruction_loss.1
$region0: #{reconstruction_loss.1}
  #allocation0 [shape = 'u32[]', space=smem, size = 0x4, offset = 0x4, fixed_abs, tag = 'smem constant byte address 0x4 - core index']
  #allocation1 [shape = 'u32[72,128]{1,0:T(1,128)}', space=vmem, size = 0x9000, scoped, tag = 'internal scratch']
  %s0 = inlined_call_operand.vmem [shape: f32[4,128], index: 0, kind: input, shape index: {}]
  %s1 = inlined_call_operand.vmem [shape: f32[4,128], index: 1, kind: input, shape index: {}]
  %s2 = inlined_call_operand.vmem [shape: f32[128,4], index: 2, kind: input, shape index: {}]
  %s3 = inlined_call_operand.vmem [shape: f32[1,8,128], index: 3, kind: output, shape index: {}]
  %s4 = sld [smem:[#allocation0]]
  $region22: #{reconstruction_loss.1} parent=0
    _
  %s6 = ssub.s32 1, %s4
  %s7 = scalar_select 0, %s6, %s4
  // Predicated region
  $region2: #{reconstruction_loss.1} parent=0 // pred_check
    _
  $region3: #{reconstruction_loss.1} parent=0 // pred_check_branch
    %9 = sbr.rel (0) target = $region5
  $region4: #{reconstruction_loss.1} parent=0 // pred_region
    _
  $region5: #{reconstruction_loss.1} parent=0 // pred_fallthru
    _
  // Predicated region
  $region6: #{reconstruction_loss.1} parent=0 // pred_check
    _
  $region7: #{reconstruction_loss.1} parent=0 // pred_check_branch
    %11 = sbr.rel (0) target = $region9
  $region8: #{reconstruction_loss.1} parent=0 // pred_region
    _
  $region9: #{reconstruction_loss.1} parent=0 // pred_fallthru
    _
  // Predicated region
  $region10: #{reconstruction_loss.1} parent=0 // pred_check
    _
  $region11: #{reconstruction_loss.1} parent=0 // pred_check_branch
    %13 = sbr.rel (0) target = $region13
  $region12: #{reconstruction_loss.1} parent=0 // pred_region
    _
  $region13: #{reconstruction_loss.1} parent=0 // pred_fallthru
    _
  %v14 = vld [vmem:[%s0] sm:$0xf]
  %v15 = vld [vmem:[%s1] sm:$0xf]
  %v16 = vsub.f32 %v14, %v15
  %v17 = vand.u32 2147483647, %v16
  %vm18 = vcmask 1043456
  %v19 = vsel %vm18, %v17, 0.0
  %20 = vadd.xlane.f32.xlu0 %v19
  %v21 = vpop.xlane.xlu0 %20
  %v22 = vrot.slane %v21, 4
  %v23 = vadd.f32 %v21, %v22
  %v24 = vrot.slane %v23, 2
  %v25 = vadd.f32 %v23, %v24
  %v26 = vrot.slane %v25, 1
  %v27 = vadd.f32 %v25, %v26
  %s28 = vtos %v27
  %v29 = vmul.f32 %v16, %v16
  %v30 = vsel %vm18, %v29, 0.0
  %31 = vadd.xlane.f32.xlu0 %v30
  %v32 = vpop.xlane.xlu0 %31
  %v33 = vrot.slane %v32, 4
  %v34 = vadd.f32 %v32, %v33
  %v35 = vrot.slane %v34, 2
  %v36 = vadd.f32 %v34, %v35
  %v37 = vrot.slane %v36, 1
  %v38 = vadd.f32 %v36, %v37
  %s39 = vtos %v38
  %v40 = vmul.f32 %v14, %v15
  %v41 = vmul.f32 %v14, %v14
  %v42 = vmul.f32 %v15, %v15
  %v43 = vld [vmem:[%s2] sm:$0xff]
  %v44 = vld [vmem:[%s2 + $0x8] sm:$0xff]
  %v45 = vld [vmem:[%s2 + $0x10] sm:$0xff]
  %v46 = vld [vmem:[%s2 + $0x18] sm:$0xff]
  %v47 = vld [vmem:[%s2 + $0x20] sm:$0xff]
  %v48 = vld [vmem:[%s2 + $0x28] sm:$0xff]
  %v49 = vld [vmem:[%s2 + $0x30] sm:$0xff]
  %v50 = vld [vmem:[%s2 + $0x38] sm:$0xff]
  %v51 = vld [vmem:[%s2 + $0x40] sm:$0xff]
  %v52 = vld [vmem:[%s2 + $0x48] sm:$0xff]
  %v53 = vld [vmem:[%s2 + $0x50] sm:$0xff]
  %v54 = vld [vmem:[%s2 + $0x58] sm:$0xff]
  %v55 = vld [vmem:[%s2 + $0x60] sm:$0xff]
  %v56 = vld [vmem:[%s2 + $0x68] sm:$0xff]
  %v57 = vld [vmem:[%s2 + $0x70] sm:$0xff]
  %v58 = vld [vmem:[%s2 + $0x78] sm:$0xff]
  %59 = vmatpush.msra.mxu0 %v58
  %60 = vmatpush.msra.mxu0 %v57
  %61 = vmatpush.msra.mxu0 %v56
  %62 = vmatpush.msra.mxu0 %v55
  %63 = vmatpush.msra.mxu0 %v54
  %64 = vmatpush.msra.mxu0 %v53
  %65 = vmatpush.msra.mxu0 %v52
  %66 = vmatpush.msra.mxu0 %v51
  %67 = vmatpush.msra.mxu0 %v50
  %68 = vmatpush.msra.mxu0 %v49
  %69 = vmatpush.msra.mxu0 %v48
  %70 = vmatpush.msra.mxu0 %v47
  %71 = vmatpush.msra.mxu0 %v46
  %72 = vmatpush.msra.mxu0 %v45
  %73 = vmatpush.msra.mxu0 %v44
  %74 = vmatpush.msra.mxu0 %v43
  %75 = vmatmul.f32.gmra.mxu0 %v40
  %v76 = vpop.f32.mrf.mxu0
  %v77 = vadd.f32 0.0, %v76
  %78 = vdwg.mxu0
  %79 = vmatpush.msra.mxu0 %v58
  %80 = vmatpush.msra.mxu0 %v57
  %81 = vmatpush.msra.mxu0 %v56
  %82 = vmatpush.msra.mxu0 %v55
  %83 = vmatpush.msra.mxu0 %v54
  %84 = vmatpush.msra.mxu0 %v53
  %85 = vmatpush.msra.mxu0 %v52
  %86 = vmatpush.msra.mxu0 %v51
  %87 = vmatpush.msra.mxu0 %v50
  %88 = vmatpush.msra.mxu0 %v49
  %89 = vmatpush.msra.mxu0 %v48
  %90 = vmatpush.msra.mxu0 %v47
  %91 = vmatpush.msra.mxu0 %v46
  %92 = vmatpush.msra.mxu0 %v45
  %93 = vmatpush.msra.mxu0 %v44
  %94 = vmatpush.msra.mxu0 %v43
  %95 = vmatmul.f32.gmra.mxu0 %v41
  %v96 = vpop.f32.mrf.mxu0
  %v97 = vadd.f32 0.0, %v96
  %98 = vdwg.mxu0
  %99 = vmatpush.msra.mxu0 %v58
  %100 = vmatpush.msra.mxu0 %v57
  %101 = vmatpush.msra.mxu0 %v56
  %102 = vmatpush.msra.mxu0 %v55
  %103 = vmatpush.msra.mxu0 %v54
  %104 = vmatpush.msra.mxu0 %v53
  %105 = vmatpush.msra.mxu0 %v52
  %106 = vmatpush.msra.mxu0 %v51
  %107 = vmatpush.msra.mxu0 %v50
  %108 = vmatpush.msra.mxu0 %v49
  %109 = vmatpush.msra.mxu0 %v48
  %110 = vmatpush.msra.mxu0 %v47
  %111 = vmatpush.msra.mxu0 %v46
  %112 = vmatpush.msra.mxu0 %v45
  %113 = vmatpush.msra.mxu0 %v44
  %114 = vmatpush.msra.mxu0 %v43
  %115 = vmatmul.f32.gmra.mxu0 %v42
  %v116 = vpop.f32.mrf.mxu0
  %v117 = vadd.f32 0.0, %v116
  %118 = vdwg.mxu0
  %v119 = vmax.f32 %v97, 1e-16
  %v120 = vrsqrt.pop %v119
  %v121 = vmul.f32 %v120, %v119
  %v122 = vmul.f32 %v121, %v120
  %v123 = vmul.f32 0.5, %v122
  %v124 = vsub.f32 1.5, %v123
  %v125 = vmul.f32 %v120, %v124
  %vm126 = vweird.f32 %v119
  %vm127 = vweird.f32 %v120
  %vm128 = vmor %vm126, %vm127
  %v129 = vsel %vm128, %v120, %v125
  %v130 = vmul.f32 %v77, %v129
  %v131 = vmax.f32 %v117, 1e-16
  %v132 = vrsqrt.pop %v131
  %v133 = vmul.f32 %v132, %v131
  %v134 = vmul.f32 %v133, %v132
  %v135 = vmul.f32 0.5, %v134
  %v136 = vsub.f32 1.5, %v135
  %v137 = vmul.f32 %v132, %v136
  %vm138 = vweird.f32 %v131
  %vm139 = vweird.f32 %v132
  %vm140 = vmor %vm138, %vm139
  %v141 = vsel %vm140, %v132, %v137
  %v142 = vmul.f32 %v130, %v141
  %vm143 = vcmask 27648
  %v144 = vsel %vm143, %v142, 0.0
  %145 = vadd.xlane.f32.xlu0 %v144
  %v146 = vpop.xlane.xlu0 %145
  %v147 = vrot.slane %v146, 4
  %v148 = vadd.f32 %v146, %v147
  %v149 = vrot.slane %v148, 2
  %v150 = vadd.f32 %v148, %v149
  %v151 = vrot.slane %v150, 1
  %v152 = vadd.f32 %v150, %v151
  %s153 = vtos %v152
  %v154 = vlaneseq
  %v155 = vshrl.u32 %v154, 7
  %vm156 = vcmp.eq.s32.totalorder %v155, 0
  %vm157 = vcmp.eq.s32.totalorder %v155, 1
  %vm158 = vcmp.eq.s32.totalorder %v155, 2
  %v159 = vstv %s153
  %v160 = vsel %vm158, %v159, 0.0
  %v161 = vstv %s39
  %v162 = vsel %vm157, %v161, %v160
  %v163 = vstv %s28
  %v164 = vsel %vm156, %v163, %v162
  %165 = vst [vmem:[%s3] sm:$0xff] %v164
  // Predicated region
  $region14: #{reconstruction_loss.1} parent=0 // pred_check
    _
  $region15: #{reconstruction_loss.1} parent=0 // pred_check_branch
    %167 = sbr.rel (0) target = $region17
  $region16: #{reconstruction_loss.1} parent=0 // pred_region
    _
  $region17: #{reconstruction_loss.1} parent=0 // pred_fallthru
    _
  // Predicated region
  $region18: #{reconstruction_loss.1} parent=0 // pred_check
    _
  $region19: #{reconstruction_loss.1} parent=0 // pred_check_branch
    %169 = sbr.rel (0) target = $region21
  $region20: #{reconstruction_loss.1} parent=0 // pred_region
    _
  $region21: #{reconstruction_loss.1} parent=0 // pred_fallthru
    _

</llo_original>
